<compile_context>
chip_gen: v7x
topology: tpu7x:2x2x1
jax: 0.10.0
libtpu: 0.0.40
codegen_flags: <defaults>
</compile_context>

<pallas_src>
import jax
import jax.numpy as jnp
from jax.experimental import pallas as pl
from jax.experimental.pallas import tpu as pltpu

LOWER = 5e-06
P1 = 3.5
P2 = -3.5
P3 = -1.0
NUM_DATA = 20

LANE_W = 1024         # interleaved lanes per row: 512 (x1, x2) pairs, multiple of 128
MAX_TILE_ROWS = 512   # 512 x 1024 x 4 B = 2 MiB per block (v5e/v6e/v7x-safe)
TARGET_GRID = 8       # aim for >= 8 row tiles so the pipeline / both v7x TCs have work


def _round_up(a, b):
    return ((a + b - 1) // b) * b


def toy_kernel(z_ref, x_ref, f_ref):
    """One (tile_rows, LANE_W) interleaved tile: [x1,x2,...] -> [f1,f2,...].

    z_ref : SMEM (2,)                 float32  -- coupling vector (z0, z1)
    x_ref : VMEM (tile_rows, LANE_W)  float32  -- interleaved (x1, x2) pairs
    f_ref : VMEM (tile_rows, LANE_W)  float32  -- interleaved (f1, f2) pairs
    """
    v = x_ref[...]
    rows, w = x_ref.shape

    # Lane parity: even lanes hold x1 / emit f1, odd lanes hold x2 / emit f2.
    lane = jax.lax.broadcasted_iota(jnp.int32, (rows, w), 1)
    even = (lane & 1) == 0

    # Broadcast each point's (x1, x2) to both of its lanes (XLU rolls + VPU selects).
    # roll(v, 1)[i]   == v[i-1]  -> x1 seen from the odd lane
    # roll(v, w-1)[i] == v[i+1]  -> x2 seen from the even lane
    x1 = jnp.where(even, v, pltpu.roll(v, shift=1, axis=1))
    x2 = jnp.where(even, pltpu.roll(v, shift=w - 1, axis=1), v)

    # Scalar coupling coefficients (scalar ALU, free).
    a0 = 2.0 * z_ref[0]
    a1 = 5.5 * z_ref[1]

    # Single EUP tanh per lane; tanh(x2) via the double-angle identity.
    th = jnp.tanh(0.5 * x2)                 # tanh(x2/2)
    t = (th + th) / (1.0 + th * th)         # tanh(x2)
    c1 = jnp.maximum(th, 0.0)               # clamp(tanh(0.5*x2), 0)
    c2 = jnp.maximum(-th, 0.0)              # clamp(tanh(-0.5*x2), 0)

    # Per-lane constants selecting the f1 (even) vs f2 (odd) branch.
    #   f1: |0.5*(-x1-7) - tanh(-x2)| = |-0.5*x1 - 3.5 + t|
    #   f2: |0.5*(-x1+3) + tanh(-x2) + 2| = |-0.5*x1 + 3.5 - t|
    c_log = jnp.where(even, -3.5, 3.5)
    s_t = jnp.where(even, 1.0, -1.0)
    c_p = jnp.where(even, P1, P2)
    s_ax = jnp.where(even, -1.0, 1.0)       # -2*z0*x1 for f1, +2*z0*x1 for f2

    arg = -0.5 * x1 + c_log + s_t * t
    f_log = jnp.log(jnp.maximum(jnp.abs(arg), LOWER)) + 6.0

    x2_term = 0.5 * (P3 - x2) ** 2
    f_sq = ((c_p - x1) ** 2 + x2_term) / 10.0 - 20.0

    f_ref[...] = f_log * c1 + (f_sq + s_ax * (a0 * x1) - a1 * x2) * c2


def toy_batch_forward(x, z, *, max_tile_rows=MAX_TILE_ROWS):
    """Matches Toy.batch_forward (no grad): x (N, 2) f32, z (2,) -> f (N, 2)."""
    x = jnp.asarray(x, jnp.float32)
    z = jnp.asarray(z, jnp.float32).reshape(-1)
    n = x.shape[0]

    flat = x.reshape(-1)                    # (2N,) -- free, row-major interleave
    total = flat.shape[0]

    rows = -(-total // LANE_W)
    max_tile_rows = max(8, (max_tile_rows // 8) * 8)
    # Aim for >= TARGET_GRID row tiles so DMA/compute overlap and (on v7x) both
    # TensorCores get work; cap the block at 2 MiB for VMEM safety on all chips.
    tile_rows = min(max_tile_rows, max(8, _round_up(-(-rows // TARGET_GRID), 8)))
    rows_pad = _round_up(rows, tile_rows)
    total_pad = rows_pad * LANE_W

    padded = total_pad != total
    if padded:
        # Single extra pass only when N is misaligned; aligned N is zero-copy.
        flat = jnp.pad(flat, (0, total_pad - total))
    x2d = flat.reshape(rows_pad, LANE_W)

    blk = pl.BlockSpec((tile_rows, LANE_W), lambda i, z_s: (i, 0))
    out = pl.pallas_call(
        toy_kernel,
        out_shape=jax.ShapeDtypeStruct((rows_pad, LANE_W), jnp.float32),
        grid_spec=pltpu.PrefetchScalarGridSpec(
            num_scalar_prefetch=1,          # z -> SMEM
            grid=(rows_pad // tile_rows,),
            in_specs=[blk],
            out_specs=blk,
        ),
        compiler_params=pltpu.CompilerParams(
            dimension_semantics=("parallel",)),
    )(z, x2d)

    if padded:
        return out.reshape(-1)[:total].reshape(n, 2)
    return out.reshape(n, 2)                # free: same row-major interleave


def toy_batch_forward_ref(x, z):
    """Pure-JAX reference mirroring Toy.__forward__ (sanity check)."""
    x = jnp.asarray(x, jnp.float32)
    z = jnp.asarray(z, jnp.float32).reshape(-1)
    x1, x2 = x[:, 0], x[:, 1]
    z0, z1 = z[0], z[1]
    f1 = jnp.log(jnp.maximum(jnp.abs(0.5 * (-x1 - 7.0) - jnp.tanh(-x2)), LOWER)) + 6.0
    f2 = jnp.log(jnp.maximum(jnp.abs(0.5 * (-x1 + 3.0) + jnp.tanh(-x2) + 2.0), LOWER)) + 6.0
    c1 = jnp.maximum(jnp.tanh(x2 * 0.5), 0.0)
    c2 = jnp.maximum(jnp.tanh(-x2 * 0.5), 0.0)
    f1_sq = ((-x1 + P1) ** 2 + 0.5 * (-x2 + P3) ** 2) / 10.0 - 20.0
    f2_sq = ((-x1 + P2) ** 2 + 0.5 * (-x2 + P3) ** 2) / 10.0 - 20.0
    f1o = f1 * c1 + (f1_sq - 2.0 * z0 * x1 - 5.5 * z1 * x2) * c2
    f2o = f2 * c1 + (f2_sq + 2.0 * z0 * x1 - 5.5 * z1 * x2) * c2
    return jnp.stack([f1o, f2o], axis=-1)


if __name__ == "__main__":
    key = jax.random.PRNGKey(0)
    k_x, k_emp, k_mid, k_rag, k_sto = jax.random.split(key, 5)

    # Deterministic synthetic stand-in for the .mat empirical dataset (2 x num_data).
    emp_data_set = jax.random.normal(k_emp, (2, NUM_DATA), dtype=jnp.float32)
    emp_data_mean = jnp.mean(emp_data_set, axis=1)              # data_type='emp'
    z_pop = jnp.zeros((2,), jnp.float32)                        # data_type='pop'
    batch_idx = jax.random.randint(k_sto, (4,), 0, NUM_DATA)    # data_type='stoch'
    z_sto = jnp.mean(emp_data_set[:, batch_idx], axis=1)

    # Small batch (matches Toy.batch_forward with x of shape (N, 2)).
    N = 8
    x = jax.random.normal(k_x, (N, 2), dtype=jnp.float32) * 2.0
    f_pop = jax.block_until_ready(toy_batch_forward(x, z_pop))
    f_emp = jax.block_until_ready(toy_batch_forward(x, emp_data_mean))
    assert f_pop.shape == (N, 2) and f_emp.shape == (N, 2)
    assert jnp.allclose(f_pop, toy_batch_forward_ref(x, z_pop), rtol=1e-5, atol=1e-5)
    assert jnp.allclose(f_emp, toy_batch_forward_ref(x, emp_data_mean), rtol=1e-5, atol=1e-5)

    # Aligned multi-tile path: grid=(2,), zero-copy in/out (no pad, no depad slice).
    N2 = 8192
    xm = jax.random.normal(k_mid, (N2, 2), dtype=jnp.float32) * 2.0
    f_mid = jax.block_until_ready(toy_batch_forward(xm, z_sto))
    assert f_mid.shape == (N2, 2)
    assert jnp.allclose(f_mid, toy_batch_forward_ref(xm, z_sto), rtol=1e-5, atol=1e-5)

    # Ragged N: exercises the single-pad fallback and the multi-tile grid together.
    N3 = 5000
    xr = jax.random.normal(k_rag, (N3, 2), dtype=jnp.float32) * 2.0
    f_rag = jax.block_until_ready(toy_batch_forward(xr, emp_data_mean))
    assert f_rag.shape == (N3, 2)
    assert jnp.allclose(f_rag, toy_batch_forward_ref(xr, emp_data_mean), rtol=1e-5, atol=1e-5)

    print("KERNEL_OK")
</pallas_src>

<mosaic_0001>
module attributes {stable_mosaic.version = 11 : i64} {
  func.func @toy_kernel(%arg0: i32, %arg1: memref<2xf32, #tpu.memory_space<smem>>, %arg2: memref<8x1024xf32, #tpu.memory_space<vmem>>, %arg3: memref<8x1024xf32, #tpu.memory_space<vmem>>) attributes {dimension_semantics = [#tpu.dimension_semantics<parallel>], iteration_bounds = array<i64: 1>, scalar_prefetch = 1 : i64, scratch_operands = 0 : i64, tpu.core_type = #tpu.core_type<tc>, window_params = [{transform_indices = @transform_0, window_bounds = array<i64: 8, 1024>}, {transform_indices = @transform_1, window_bounds = array<i64: 8, 1024>}]} {
    %c0 = arith.constant 0 : index
    %c0_0 = arith.constant 0 : index
    %0 = vector.load %arg2[%c0, %c0_0] : memref<8x1024xf32, #tpu.memory_space<vmem>>, vector<8x1024xf32>
    %1 = tpu.iota {dimensions = array<i32: 1>} : vector<8x1024xi32>
    %c1_i32 = arith.constant 1 : i32
    %2 = vector.broadcast %c1_i32 : i32 to vector<8x1024xi32>
    %3 = arith.andi %1, %2 : vector<8x1024xi32>
    %c0_i32 = arith.constant 0 : i32
    %4 = vector.broadcast %c0_i32 : i32 to vector<8x1024xi32>
    %5 = arith.cmpi eq, %3, %4 : vector<8x1024xi32>
    %c1_i32_1 = arith.constant 1 : i32
    %6 = tpu.dynamic_rotate %0 by %c1_i32_1 dim 1 : vector<8x1024xf32>, i32 -> vector<8x1024xf32>
    %7 = arith.select %5, %0, %6 : vector<8x1024xi1>, vector<8x1024xf32>
    %c1023_i32 = arith.constant 1023 : i32
    %8 = tpu.dynamic_rotate %0 by %c1023_i32 dim 1 : vector<8x1024xf32>, i32 -> vector<8x1024xf32>
    %9 = arith.select %5, %8, %0 : vector<8x1024xi1>, vector<8x1024xf32>
    %c0_2 = arith.constant 0 : index
    %10 = memref.load %arg1[%c0_2] : memref<2xf32, #tpu.memory_space<smem>>
    %cst = arith.constant 2.000000e+00 : f32
    %11 = arith.mulf %cst, %10 : f32
    %c1 = arith.constant 1 : index
    %12 = memref.load %arg1[%c1] : memref<2xf32, #tpu.memory_space<smem>>
    %cst_3 = arith.constant 5.500000e+00 : f32
    %13 = arith.mulf %cst_3, %12 : f32
    %cst_4 = arith.constant 5.000000e-01 : f32
    %14 = vector.broadcast %cst_4 : f32 to vector<8x1024xf32>
    %15 = arith.mulf %14, %9 : vector<8x1024xf32>
    %16 = math.tanh %15 : vector<8x1024xf32>
    %17 = arith.addf %16, %16 : vector<8x1024xf32>
    %18 = arith.mulf %16, %16 : vector<8x1024xf32>
    %cst_5 = arith.constant 1.000000e+00 : f32
    %19 = vector.broadcast %cst_5 : f32 to vector<8x1024xf32>
    %20 = arith.addf %19, %18 : vector<8x1024xf32>
    %21 = arith.divf %17, %20 : vector<8x1024xf32>
    %cst_6 = arith.constant 0.000000e+00 : f32
    %22 = vector.broadcast %cst_6 : f32 to vector<8x1024xf32>
    %23 = arith.maximumf %16, %22 : vector<8x1024xf32>
    %cst_7 = arith.constant 0.000000e+00 : f32
    %24 = vector.broadcast %cst_7 : f32 to vector<8x1024xf32>
    %25 = arith.subf %24, %16 : vector<8x1024xf32>
    %cst_8 = arith.constant 0.000000e+00 : f32
    %26 = vector.broadcast %cst_8 : f32 to vector<8x1024xf32>
    %27 = arith.maximumf %25, %26 : vector<8x1024xf32>
    %cst_9 = arith.constant -3.500000e+00 : f32
    %cst_10 = arith.constant 3.500000e+00 : f32
    %28 = vector.broadcast %cst_9 : f32 to vector<8x1024xf32>
    %29 = vector.broadcast %cst_10 : f32 to vector<8x1024xf32>
    %30 = arith.select %5, %28, %29 : vector<8x1024xi1>, vector<8x1024xf32>
    %cst_11 = arith.constant 1.000000e+00 : f32
    %cst_12 = arith.constant -1.000000e+00 : f32
    %31 = vector.broadcast %cst_11 : f32 to vector<8x1024xf32>
    %32 = vector.broadcast %cst_12 : f32 to vector<8x1024xf32>
    %33 = arith.select %5, %31, %32 : vector<8x1024xi1>, vector<8x1024xf32>
    %cst_13 = arith.constant 3.500000e+00 : f32
    %cst_14 = arith.constant -3.500000e+00 : f32
    %34 = vector.broadcast %cst_13 : f32 to vector<8x1024xf32>
    %35 = vector.broadcast %cst_14 : f32 to vector<8x1024xf32>
    %36 = arith.select %5, %34, %35 : vector<8x1024xi1>, vector<8x1024xf32>
    %cst_15 = arith.constant -1.000000e+00 : f32
    %cst_16 = arith.constant 1.000000e+00 : f32
    %37 = vector.broadcast %cst_15 : f32 to vector<8x1024xf32>
    %38 = vector.broadcast %cst_16 : f32 to vector<8x1024xf32>
    %39 = arith.select %5, %37, %38 : vector<8x1024xi1>, vector<8x1024xf32>
    %cst_17 = arith.constant -5.000000e-01 : f32
    %40 = vector.broadcast %cst_17 : f32 to vector<8x1024xf32>
    %41 = arith.mulf %40, %7 : vector<8x1024xf32>
    %42 = arith.addf %41, %30 : vector<8x1024xf32>
    %43 = arith.mulf %33, %21 : vector<8x1024xf32>
    %44 = arith.addf %42, %43 : vector<8x1024xf32>
    %45 = math.absf %44 : vector<8x1024xf32>
    %cst_18 = arith.constant 5.000000e-06 : f32
    %46 = vector.broadcast %cst_18 : f32 to vector<8x1024xf32>
    %47 = arith.maximumf %45, %46 : vector<8x1024xf32>
    %48 = math.log %47 : vector<8x1024xf32>
    %cst_19 = arith.constant 6.000000e+00 : f32
    %49 = vector.broadcast %cst_19 : f32 to vector<8x1024xf32>
    %50 = arith.addf %48, %49 : vector<8x1024xf32>
    %cst_20 = arith.constant -1.000000e+00 : f32
    %51 = vector.broadcast %cst_20 : f32 to vector<8x1024xf32>
    %52 = arith.subf %51, %9 : vector<8x1024xf32>
    %53 = arith.mulf %52, %52 : vector<8x1024xf32>
    %cst_21 = arith.constant 5.000000e-01 : f32
    %54 = vector.broadcast %cst_21 : f32 to vector<8x1024xf32>
    %55 = arith.mulf %54, %53 : vector<8x1024xf32>
    %56 = arith.subf %36, %7 : vector<8x1024xf32>
    %57 = arith.mulf %56, %56 : vector<8x1024xf32>
    %58 = arith.addf %57, %55 : vector<8x1024xf32>
    %cst_22 = arith.constant 1.000000e+01 : f32
    %59 = vector.broadcast %cst_22 : f32 to vector<8x1024xf32>
    %60 = arith.divf %58, %59 : vector<8x1024xf32>
    %cst_23 = arith.constant 2.000000e+01 : f32
    %61 = vector.broadcast %cst_23 : f32 to vector<8x1024xf32>
    %62 = arith.subf %60, %61 : vector<8x1024xf32>
    %63 = arith.mulf %50, %23 : vector<8x1024xf32>
    %64 = vector.broadcast %11 : f32 to vector<8x1024xf32>
    %65 = arith.mulf %64, %7 : vector<8x1024xf32>
    %66 = arith.mulf %39, %65 : vector<8x1024xf32>
    %67 = arith.addf %62, %66 : vector<8x1024xf32>
    %68 = vector.broadcast %13 : f32 to vector<8x1024xf32>
    %69 = arith.mulf %68, %9 : vector<8x1024xf32>
    %70 = arith.subf %67, %69 : vector<8x1024xf32>
    %71 = arith.mulf %70, %27 : vector<8x1024xf32>
    %72 = arith.addf %63, %71 : vector<8x1024xf32>
    %c0_24 = arith.constant 0 : index
    %c0_25 = arith.constant 0 : index
    %73 = vector.load %arg3[%c0_24, %c0_25] : memref<8x1024xf32, #tpu.memory_space<vmem>>, vector<8x1024xf32>
    tpu.vector_store %arg3[%c0_24, %c0_25], %72 {strides = array<i32>} : memref<8x1024xf32, #tpu.memory_space<vmem>>, vector<8x1024xf32>,
    return
  }
  func.func @transform_0(%arg0: i32, %arg1: memref<2xf32, #tpu.memory_space<smem>>) -> (i32, i32) {
    %c0_i32 = arith.constant 0 : i32
    %c0_i32_0 = arith.constant 0 : i32
    return %arg0, %c0_i32 : i32, i32
  }
  func.func @transform_1(%arg0: i32, %arg1: memref<2xf32, #tpu.memory_space<smem>>) -> (i32, i32) {
    %c0_i32 = arith.constant 0 : i32
    %c0_i32_0 = arith.constant 0 : i32
    return %arg0, %c0_i32 : i32, i32
  }
}

</mosaic_0001>

<llo_original>
// kernel: tpu_custom_call.1
$region0: #{tpu_custom_call.1}
  #allocation0 [shape = 'u32[]', space=smem, size = 0x4, offset = 0x4, fixed_abs, tag = 'smem constant byte address 0x4 - core index']
  #allocation1 [shape = 'u32[144,128]{1,0:T(1,128)}', space=vmem, size = 0x12000, scoped, tag = 'internal scratch']
  #allocation2 [shape = 's32[1]{0}', space=sflag, size = 0x4, scoped, tag = 'scoped memory for tpu_custom_call.1']
  #allocation3 [shape = 'u8[512]{0}', space=smem, size = 0x200, scoped, tag = 'prefetched SMEM operand 0']
  %s0 = inlined_call_operand.hbm [shape: f32[2], index: 0, kind: input, shape index: {}]
  %s1 = inlined_call_operand.hbm [shape: f32[8,1024], index: 1, kind: input, shape index: {}]
  %s2 = inlined_call_operand.hbm [shape: f32[8,1024], index: 2, kind: output, shape index: {}]
  %s3 = sld [smem:[#allocation0]]
  $region18: #{tpu_custom_call.1} parent=0
    _
  %s5 = ssub.s32 1, %s3
  %s6 = scalar_select 0, %s5, %s3
  %8 = dma.hbm_to_smem %s0, 16, [#allocation3], [#allocation2]
  %9 = dma.done [#allocation2], 16
  %10 = sfence
  $region1: #{tpu_custom_call.1} parent=0
    #allocation4 [shape = 'u8[32768]{0}', space=vmem, size = 0x8000, scoped, tag = 'input window, operand 1, single buffered']
    #allocation5 [shape = 's32[1]{0}', space=sflag, size = 0x4, scoped, tag = 'scoped memory for tpu_custom_call.1']
    #allocation6 [shape = 's32[1]{0}', space=sflag, size = 0x4, scoped, tag = 'scoped memory for tpu_custom_call.1']
    #allocation7 [shape = 'u8[32768]{0}', space=vmem, size = 0x8000, scoped, tag = 'output window, operand 0, single buffered']
    %11 = vsyncpa [#allocation5], 0
    %12 = vsyncpa [#allocation6], 0
    // Predicated region
    $region2: #{tpu_custom_call.1} parent=1 // pred_check
      _
    $region3: #{tpu_custom_call.1} parent=1 // pred_check_branch
      %14 = sbr.rel (0) target = $region5
    $region4: #{tpu_custom_call.1} parent=1 // pred_region
      %s16 = ssub.s32 1024, 1024
      %17 = vsyncadd [#allocation5], %s16
      %s19 = sshll.u32 [#allocation4], 4
      %s20 = int_to_ptr.vmem [resolvable:$true] %s19
      %22 = dma.hbm_to_vmem [thread:$0]  %s1, 1024, %s20, [#allocation5]
    $region5: #{tpu_custom_call.1} parent=1 // pred_fallthru
      _
    // Predicated region
    $region6: #{tpu_custom_call.1} parent=1 // pred_check
      _
    $region7: #{tpu_custom_call.1} parent=1 // pred_check_branch
      %24 = sbr.rel (0) target = $region9
    $region8: #{tpu_custom_call.1} parent=1 // pred_region
      %25 = dma.done [#allocation5], 1024
    $region9: #{tpu_custom_call.1} parent=1 // pred_fallthru
      _
    %v26 = vld [vmem:[#allocation4] sm:$0xff]
    %v27 = vld [vmem:[#allocation4 + $0x8] sm:$0xff]
    %v28 = vld [vmem:[#allocation4 + $0x10] sm:$0xff]
    %v29 = vld [vmem:[#allocation4 + $0x18] sm:$0xff]
    %v30 = vld [vmem:[#allocation4 + $0x20] sm:$0xff]
    %v31 = vld [vmem:[#allocation4 + $0x28] sm:$0xff]
    %v32 = vld [vmem:[#allocation4 + $0x30] sm:$0xff]
    %v33 = vld [vmem:[#allocation4 + $0x38] sm:$0xff]
    %v34 = vlaneseq
    %v35 = vand.u32 %v34, 127
    %v36 = vadd.s32 %v35, 128
    %v37 = vadd.s32 %v35, 256
    %v38 = vadd.s32 %v35, 384
    %v39 = vadd.s32 %v35, 512
    %v40 = vadd.s32 %v35, 640
    %v41 = vadd.s32 %v35, 768
    %v42 = vadd.s32 %v35, 896
    %v43 = vand.u32 %v35, 1
    %v44 = vand.u32 %v36, 1
    %v45 = vand.u32 %v37, 1
    %v46 = vand.u32 %v38, 1
    %v47 = vand.u32 %v39, 1
    %v48 = vand.u32 %v40, 1
    %v49 = vand.u32 %v41, 1
    %v50 = vand.u32 %v42, 1
    %vm51 = vcmp.eq.s32.totalorder %v43, 0
    %vm52 = vcmp.eq.s32.totalorder %v44, 0
    %vm53 = vcmp.eq.s32.totalorder %v45, 0
    %vm54 = vcmp.eq.s32.totalorder %v46, 0
    %vm55 = vcmp.eq.s32.totalorder %v47, 0
    %vm56 = vcmp.eq.s32.totalorder %v48, 0
    %vm57 = vcmp.eq.s32.totalorder %v49, 0
    %vm58 = vcmp.eq.s32.totalorder %v50, 0
    %59 = vrot.lane.b32.xlu0 %v26, 1
    %v60 = vpop.permute.xlu0 %59
    %61 = vrot.lane.b32.xlu0 %v27, 1
    %v62 = vpop.permute.xlu0 %61
    %63 = vrot.lane.b32.xlu0 %v28, 1
    %v64 = vpop.permute.xlu0 %63
    %65 = vrot.lane.b32.xlu0 %v29, 1
    %v66 = vpop.permute.xlu0 %65
    %67 = vrot.lane.b32.xlu0 %v30, 1
    %v68 = vpop.permute.xlu0 %67
    %69 = vrot.lane.b32.xlu0 %v31, 1
    %v70 = vpop.permute.xlu0 %69
    %71 = vrot.lane.b32.xlu0 %v32, 1
    %v72 = vpop.permute.xlu0 %71
    %73 = vrot.lane.b32.xlu0 %v33, 1
    %v74 = vpop.permute.xlu0 %73
    %vm75 = vcmp.lt.s32.totalorder %v35, 1
    %v76 = vsel %vm75, %v72, %v74
    %v77 = vsel %vm75, %v70, %v72
    %v78 = vsel %vm75, %v68, %v70
    %v79 = vsel %vm75, %v66, %v68
    %v80 = vsel %vm75, %v64, %v66
    %v81 = vsel %vm75, %v62, %v64
    %v82 = vsel %vm75, %v60, %v62
    %v83 = vsel %vm75, %v74, %v60
    %v84 = vsel %vm51, %v26, %v83
    %v85 = vsel %vm52, %v27, %v82
    %v86 = vsel %vm53, %v28, %v81
    %v87 = vsel %vm54, %v29, %v80
    %v88 = vsel %vm55, %v30, %v79
    %v89 = vsel %vm56, %v31, %v78
    %v90 = vsel %vm57, %v32, %v77
    %v91 = vsel %vm58, %v33, %v76
    %92 = vrot.lane.b32.xlu0 %v26, 127
    %v93 = vpop.permute.xlu0 %92
    %94 = vrot.lane.b32.xlu0 %v27, 127
    %v95 = vpop.permute.xlu0 %94
    %96 = vrot.lane.b32.xlu0 %v28, 127
    %v97 = vpop.permute.xlu0 %96
    %98 = vrot.lane.b32.xlu0 %v29, 127
    %v99 = vpop.permute.xlu0 %98
    %100 = vrot.lane.b32.xlu0 %v30, 127
    %v101 = vpop.permute.xlu0 %100
    %102 = vrot.lane.b32.xlu0 %v31, 127
    %v103 = vpop.permute.xlu0 %102
    %104 = vrot.lane.b32.xlu0 %v32, 127
    %v105 = vpop.permute.xlu0 %104
    %106 = vrot.lane.b32.xlu0 %v33, 127
    %v107 = vpop.permute.xlu0 %106
    %vm108 = vcmp.lt.s32.totalorder %v35, 127
    %v109 = vsel %vm108, %v105, %v107
    %v110 = vsel %vm108, %v103, %v105
    %v111 = vsel %vm108, %v101, %v103
    %v112 = vsel %vm108, %v99, %v101
    %v113 = vsel %vm108, %v97, %v99
    %v114 = vsel %vm108, %v95, %v97
    %v115 = vsel %vm108, %v93, %v95
    %v116 = vsel %vm108, %v107, %v93
    %v117 = vsel %vm51, %v115, %v26
    %v118 = vsel %vm52, %v114, %v27
    %v119 = vsel %vm53, %v113, %v28
    %v120 = vsel %vm54, %v112, %v29
    %v121 = vsel %vm55, %v111, %v30
    %v122 = vsel %vm56, %v110, %v31
    %v123 = vsel %vm57, %v109, %v32
    %v124 = vsel %vm58, %v116, %v33
    %s125 = sld [smem:[#allocation3]]
    %s126 = smul.f32 %s125, 2.0
    %s127 = sld [smem:[#allocation3 + $0x1]]
    %s128 = smul.f32 %s127, 5.5
    %v129 = vmul.f32 %v117, 0.5
    %v130 = vmul.f32 %v118, 0.5
    %v131 = vmul.f32 %v119, 0.5
    %v132 = vmul.f32 %v120, 0.5
    %v133 = vmul.f32 %v121, 0.5
    %v134 = vmul.f32 %v122, 0.5
    %v135 = vmul.f32 %v123, 0.5
    %v136 = vmul.f32 %v124, 0.5
    %v137 = vtanh.pop %v129
    %v138 = vtanh.pop %v130
    %v139 = vtanh.pop %v131
    %v140 = vtanh.pop %v132
    %v141 = vtanh.pop %v133
    %v142 = vtanh.pop %v134
    %v143 = vtanh.pop %v135
    %v144 = vtanh.pop %v136
    %v145 = vadd.f32 %v137, %v137
    %v146 = vadd.f32 %v138, %v138
    %v147 = vadd.f32 %v139, %v139
    %v148 = vadd.f32 %v140, %v140
    %v149 = vadd.f32 %v141, %v141
    %v150 = vadd.f32 %v142, %v142
    %v151 = vadd.f32 %v143, %v143
    %v152 = vadd.f32 %v144, %v144
    %v153 = vmul.f32 %v137, %v137
    %v154 = vmul.f32 %v138, %v138
    %v155 = vmul.f32 %v139, %v139
    %v156 = vmul.f32 %v140, %v140
    %v157 = vmul.f32 %v141, %v141
    %v158 = vmul.f32 %v142, %v142
    %v159 = vmul.f32 %v143, %v143
    %v160 = vmul.f32 %v144, %v144
    %v161 = vadd.f32 %v153, 1.0
    %v162 = vadd.f32 %v154, 1.0
    %v163 = vadd.f32 %v155, 1.0
    %v164 = vadd.f32 %v156, 1.0
    %v165 = vadd.f32 %v157, 1.0
    %v166 = vadd.f32 %v158, 1.0
    %v167 = vadd.f32 %v159, 1.0
    %v168 = vadd.f32 %v160, 1.0
    %v169 = vrcp.pop %v161
    %v170 = vmul.f32 %v145, %v169
    %v171 = vrcp.pop %v162
    %v172 = vmul.f32 %v146, %v171
    %v173 = vrcp.pop %v163
    %v174 = vmul.f32 %v147, %v173
    %v175 = vrcp.pop %v164
    %v176 = vmul.f32 %v148, %v175
    %v177 = vrcp.pop %v165
    %v178 = vmul.f32 %v149, %v177
    %v179 = vrcp.pop %v166
    %v180 = vmul.f32 %v150, %v179
    %v181 = vrcp.pop %v167
    %v182 = vmul.f32 %v151, %v181
    %v183 = vrcp.pop %v168
    %v184 = vmul.f32 %v152, %v183
    %v185 = vmax.f32 %v137, 0.0
    %v186 = vmax.f32 %v138, 0.0
    %v187 = vmax.f32 %v139, 0.0
    %v188 = vmax.f32 %v140, 0.0
    %v189 = vmax.f32 %v141, 0.0
    %v190 = vmax.f32 %v142, 0.0
    %v191 = vmax.f32 %v143, 0.0
    %v192 = vmax.f32 %v144, 0.0
    %v193 = vsub.f32 0.0, %v137
    %v194 = vsub.f32 0.0, %v138
    %v195 = vsub.f32 0.0, %v139
    %v196 = vsub.f32 0.0, %v140
    %v197 = vsub.f32 0.0, %v141
    %v198 = vsub.f32 0.0, %v142
    %v199 = vsub.f32 0.0, %v143
    %v200 = vsub.f32 0.0, %v144
    %v201 = vmax.f32 %v193, 0.0
    %v202 = vmax.f32 %v194, 0.0
    %v203 = vmax.f32 %v195, 0.0
    %v204 = vmax.f32 %v196, 0.0
    %v205 = vmax.f32 %v197, 0.0
    %v206 = vmax.f32 %v198, 0.0
    %v207 = vmax.f32 %v199, 0.0
    %v208 = vmax.f32 %v200, 0.0
    %v209 = vsel %vm51, -3.5, 3.5
    %v210 = vsel %vm52, -3.5, 3.5
    %v211 = vsel %vm53, -3.5, 3.5
    %v212 = vsel %vm54, -3.5, 3.5
    %v213 = vsel %vm55, -3.5, 3.5
    %v214 = vsel %vm56, -3.5, 3.5
    %v215 = vsel %vm57, -3.5, 3.5
    %v216 = vsel %vm58, -3.5, 3.5
    %v217 = vsel %vm51, 1.0, -1.0
    %v218 = vsel %vm52, 1.0, -1.0
    %v219 = vsel %vm53, 1.0, -1.0
    %v220 = vsel %vm54, 1.0, -1.0
    %v221 = vsel %vm55, 1.0, -1.0
    %v222 = vsel %vm56, 1.0, -1.0
    %v223 = vsel %vm57, 1.0, -1.0
    %v224 = vsel %vm58, 1.0, -1.0
    %v225 = vsel %vm51, 3.5, -3.5
    %v226 = vsel %vm52, 3.5, -3.5
    %v227 = vsel %vm53, 3.5, -3.5
    %v228 = vsel %vm54, 3.5, -3.5
    %v229 = vsel %vm55, 3.5, -3.5
    %v230 = vsel %vm56, 3.5, -3.5
    %v231 = vsel %vm57, 3.5, -3.5
    %v232 = vsel %vm58, 3.5, -3.5
    %v233 = vsel %vm51, -1.0, 1.0
    %v234 = vsel %vm52, -1.0, 1.0
    %v235 = vsel %vm53, -1.0, 1.0
    %v236 = vsel %vm54, -1.0, 1.0
    %v237 = vsel %vm55, -1.0, 1.0
    %v238 = vsel %vm56, -1.0, 1.0
    %v239 = vsel %vm57, -1.0, 1.0
    %v240 = vsel %vm58, -1.0, 1.0
    %v241 = vmul.f32 %v84, -0.5
    %v242 = vmul.f32 %v85, -0.5
    %v243 = vmul.f32 %v86, -0.5
    %v244 = vmul.f32 %v87, -0.5
    %v245 = vmul.f32 %v88, -0.5
    %v246 = vmul.f32 %v89, -0.5
    %v247 = vmul.f32 %v90, -0.5
    %v248 = vmul.f32 %v91, -0.5
    %v249 = vadd.f32 %v241, %v209
    %v250 = vadd.f32 %v242, %v210
    %v251 = vadd.f32 %v243, %v211
    %v252 = vadd.f32 %v244, %v212
    %v253 = vadd.f32 %v245, %v213
    %v254 = vadd.f32 %v246, %v214
    %v255 = vadd.f32 %v247, %v215
    %v256 = vadd.f32 %v248, %v216
    %v257 = vmul.f32 %v217, %v170
    %v258 = vmul.f32 %v218, %v172
    %v259 = vmul.f32 %v219, %v174
    %v260 = vmul.f32 %v220, %v176
    %v261 = vmul.f32 %v221, %v178
    %v262 = vmul.f32 %v222, %v180
    %v263 = vmul.f32 %v223, %v182
    %v264 = vmul.f32 %v224, %v184
    %v265 = vadd.f32 %v249, %v257
    %v266 = vadd.f32 %v250, %v258
    %v267 = vadd.f32 %v251, %v259
    %v268 = vadd.f32 %v252, %v260
    %v269 = vadd.f32 %v253, %v261
    %v270 = vadd.f32 %v254, %v262
    %v271 = vadd.f32 %v255, %v263
    %v272 = vadd.f32 %v256, %v264
    %v273 = vand.u32 2147483647, %v265
    %v274 = vand.u32 2147483647, %v266
    %v275 = vand.u32 2147483647, %v267
    %v276 = vand.u32 2147483647, %v268
    %v277 = vand.u32 2147483647, %v269
    %v278 = vand.u32 2147483647, %v270
    %v279 = vand.u32 2147483647, %v271
    %v280 = vand.u32 2147483647, %v272
    %v281 = vmax.f32 %v273, 5e-06
    %v282 = vmax.f32 %v274, 5e-06
    %v283 = vmax.f32 %v275, 5e-06
    %v284 = vmax.f32 %v276, 5e-06
    %v285 = vmax.f32 %v277, 5e-06
    %v286 = vmax.f32 %v278, 5e-06
    %v287 = vmax.f32 %v279, 5e-06
    %v288 = vmax.f32 %v280, 5e-06
    %v289 = vlog2.pop %v281
    %v290 = vmul.f32 %v289, 0.6931472
    %v291 = vlog2.pop %v282
    %v292 = vmul.f32 %v291, 0.6931472
    %v293 = vlog2.pop %v283
    %v294 = vmul.f32 %v293, 0.6931472
    %v295 = vlog2.pop %v284
    %v296 = vmul.f32 %v295, 0.6931472
    %v297 = vlog2.pop %v285
    %v298 = vmul.f32 %v297, 0.6931472
    %v299 = vlog2.pop %v286
    %v300 = vmul.f32 %v299, 0.6931472
    %v301 = vlog2.pop %v287
    %v302 = vmul.f32 %v301, 0.6931472
    %v303 = vlog2.pop %v288
    %v304 = vmul.f32 %v303, 0.6931472
    %v305 = vadd.f32 %v290, 6.0
    %v306 = vadd.f32 %v292, 6.0
    %v307 = vadd.f32 %v294, 6.0
    %v308 = vadd.f32 %v296, 6.0
    %v309 = vadd.f32 %v298, 6.0
    %v310 = vadd.f32 %v300, 6.0
    %v311 = vadd.f32 %v302, 6.0
    %v312 = vadd.f32 %v304, 6.0
    %v313 = vsub.f32 -1.0, %v117
    %v314 = vsub.f32 -1.0, %v118
    %v315 = vsub.f32 -1.0, %v119
    %v316 = vsub.f32 -1.0, %v120
    %v317 = vsub.f32 -1.0, %v121
    %v318 = vsub.f32 -1.0, %v122
    %v319 = vsub.f32 -1.0, %v123
    %v320 = vsub.f32 -1.0, %v124
    %v321 = vmul.f32 %v313, %v313
    %v322 = vmul.f32 %v314, %v314
    %v323 = vmul.f32 %v315, %v315
    %v324 = vmul.f32 %v316, %v316
    %v325 = vmul.f32 %v317, %v317
    %v326 = vmul.f32 %v318, %v318
    %v327 = vmul.f32 %v319, %v319
    %v328 = vmul.f32 %v320, %v320
    %v329 = vmul.f32 %v321, 0.5
    %v330 = vmul.f32 %v322, 0.5
    %v331 = vmul.f32 %v323, 0.5
    %v332 = vmul.f32 %v324, 0.5
    %v333 = vmul.f32 %v325, 0.5
    %v334 = vmul.f32 %v326, 0.5
    %v335 = vmul.f32 %v327, 0.5
    %v336 = vmul.f32 %v328, 0.5
    %v337 = vsub.f32 %v225, %v84
    %v338 = vsub.f32 %v226, %v85
    %v339 = vsub.f32 %v227, %v86
    %v340 = vsub.f32 %v228, %v87
    %v341 = vsub.f32 %v229, %v88
    %v342 = vsub.f32 %v230, %v89
    %v343 = vsub.f32 %v231, %v90
    %v344 = vsub.f32 %v232, %v91
    %v345 = vmul.f32 %v337, %v337
    %v346 = vmul.f32 %v338, %v338
    %v347 = vmul.f32 %v339, %v339
    %v348 = vmul.f32 %v340, %v340
    %v349 = vmul.f32 %v341, %v341
    %v350 = vmul.f32 %v342, %v342
    %v351 = vmul.f32 %v343, %v343
    %v352 = vmul.f32 %v344, %v344
    %v353 = vadd.f32 %v345, %v329
    %v354 = vadd.f32 %v346, %v330
    %v355 = vadd.f32 %v347, %v331
    %v356 = vadd.f32 %v348, %v332
    %v357 = vadd.f32 %v349, %v333
    %v358 = vadd.f32 %v350, %v334
    %v359 = vadd.f32 %v351, %v335
    %v360 = vadd.f32 %v352, %v336
    %v361 = vrcp.pop 10.0
    %v362 = vmul.f32 %v353, %v361
    %v363 = vmul.f32 %v354, %v361
    %v364 = vmul.f32 %v355, %v361
    %v365 = vmul.f32 %v356, %v361
    %v366 = vmul.f32 %v357, %v361
    %v367 = vmul.f32 %v358, %v361
    %v368 = vmul.f32 %v359, %v361
    %v369 = vmul.f32 %v360, %v361
    %v370 = vsub.f32 %v362, 20.0
    %v371 = vsub.f32 %v363, 20.0
    %v372 = vsub.f32 %v364, 20.0
    %v373 = vsub.f32 %v365, 20.0
    %v374 = vsub.f32 %v366, 20.0
    %v375 = vsub.f32 %v367, 20.0
    %v376 = vsub.f32 %v368, 20.0
    %v377 = vsub.f32 %v369, 20.0
    %v378 = vmul.f32 %v305, %v185
    %v379 = vmul.f32 %v306, %v186
    %v380 = vmul.f32 %v307, %v187
    %v381 = vmul.f32 %v308, %v188
    %v382 = vmul.f32 %v309, %v189
    %v383 = vmul.f32 %v310, %v190
    %v384 = vmul.f32 %v311, %v191
    %v385 = vmul.f32 %v312, %v192
    %v386 = vstv %s126
    %v387 = vmul.f32 %v386, %v84
    %v388 = vmul.f32 %v386, %v85
    %v389 = vmul.f32 %v386, %v86
    %v390 = vmul.f32 %v386, %v87
    %v391 = vmul.f32 %v386, %v88
    %v392 = vmul.f32 %v386, %v89
    %v393 = vmul.f32 %v386, %v90
    %v394 = vmul.f32 %v386, %v91
    %v395 = vmul.f32 %v233, %v387
    %v396 = vmul.f32 %v234, %v388
    %v397 = vmul.f32 %v235, %v389
    %v398 = vmul.f32 %v236, %v390
    %v399 = vmul.f32 %v237, %v391
    %v400 = vmul.f32 %v238, %v392
    %v401 = vmul.f32 %v239, %v393
    %v402 = vmul.f32 %v240, %v394
    %v403 = vadd.f32 %v370, %v395
    %v404 = vadd.f32 %v371, %v396
    %v405 = vadd.f32 %v372, %v397
    %v406 = vadd.f32 %v373, %v398
    %v407 = vadd.f32 %v374, %v399
    %v408 = vadd.f32 %v375, %v400
    %v409 = vadd.f32 %v376, %v401
    %v410 = vadd.f32 %v377, %v402
    %v411 = vstv %s128
    %v412 = vmul.f32 %v411, %v117
    %v413 = vmul.f32 %v411, %v118
    %v414 = vmul.f32 %v411, %v119
    %v415 = vmul.f32 %v411, %v120
    %v416 = vmul.f32 %v411, %v121
    %v417 = vmul.f32 %v411, %v122
    %v418 = vmul.f32 %v411, %v123
    %v419 = vmul.f32 %v411, %v124
    %v420 = vsub.f32 %v403, %v412
    %v421 = vsub.f32 %v404, %v413
    %v422 = vsub.f32 %v405, %v414
    %v423 = vsub.f32 %v406, %v415
    %v424 = vsub.f32 %v407, %v416
    %v425 = vsub.f32 %v408, %v417
    %v426 = vsub.f32 %v409, %v418
    %v427 = vsub.f32 %v410, %v419
    %v428 = vmul.f32 %v420, %v201
    %v429 = vmul.f32 %v421, %v202
    %v430 = vmul.f32 %v422, %v203
    %v431 = vmul.f32 %v423, %v204
    %v432 = vmul.f32 %v424, %v205
    %v433 = vmul.f32 %v425, %v206
    %v434 = vmul.f32 %v426, %v207
    %v435 = vmul.f32 %v427, %v208
    %v436 = vadd.f32 %v378, %v428
    %v437 = vadd.f32 %v379, %v429
    %v438 = vadd.f32 %v380, %v430
    %v439 = vadd.f32 %v381, %v431
    %v440 = vadd.f32 %v382, %v432
    %v441 = vadd.f32 %v383, %v433
    %v442 = vadd.f32 %v384, %v434
    %v443 = vadd.f32 %v385, %v435
    %444 = vst [vmem:[#allocation7] sm:$0xff] %v436
    %445 = vst [vmem:[#allocation7 + $0x8] sm:$0xff] %v437
    %446 = vst [vmem:[#allocation7 + $0x10] sm:$0xff] %v438
    %447 = vst [vmem:[#allocation7 + $0x18] sm:$0xff] %v439
    %448 = vst [vmem:[#allocation7 + $0x20] sm:$0xff] %v440
    %449 = vst [vmem:[#allocation7 + $0x28] sm:$0xff] %v441
    %450 = vst [vmem:[#allocation7 + $0x30] sm:$0xff] %v442
    %451 = vst [vmem:[#allocation7 + $0x38] sm:$0xff] %v443
    // Predicated region
    $region10: #{tpu_custom_call.1} parent=1 // pred_check
      _
    $region11: #{tpu_custom_call.1} parent=1 // pred_check_branch
      %453 = sbr.rel (0) target = $region13
    $region12: #{tpu_custom_call.1} parent=1 // pred_region
      %s455 = ssub.s32 1024, 1024
      %456 = vsyncadd [#allocation6], %s455
      %s458 = sshll.u32 [#allocation7], 4
      %s459 = int_to_ptr.vmem [resolvable:$true] %s458
      %461 = dma.vmem_to_hbm [thread:$0]  %s459, 1024, %s2, [#allocation6]
    $region13: #{tpu_custom_call.1} parent=1 // pred_fallthru
      _
    // Predicated region
    $region14: #{tpu_custom_call.1} parent=1 // pred_check
      _
    $region15: #{tpu_custom_call.1} parent=1 // pred_check_branch
      %463 = sbr.rel (0) target = $region17
    $region16: #{tpu_custom_call.1} parent=1 // pred_region
      %464 = dma.done [#allocation6], 1024
    $region17: #{tpu_custom_call.1} parent=1 // pred_fallthru
      _
    %465 = vsyncpa [#allocation5], 1
    %466 = vsyncpa [#allocation6], 1

</llo_original>
